<compile_context>
chip_gen: v6e
topology: v6e:2x2x1
jax: 0.10.0
libtpu: 0.0.40
codegen_flags: <defaults>
</compile_context>

<pallas_src>
import functools

import jax
import jax.numpy as jnp
from jax.experimental import pallas as pl
from jax.experimental.pallas import tpu as pltpu

HIDDEN = 32
PALETTE = 3
BN_EPS = 1e-5

SEG = 128                 # lane segment width inside the packed weight buffer
OUT_W = 128               # lane-dense packed output slab width
OFF_WE = 0 * SEG          # We            (H, H)
OFF_WHID = 1 * SEG        # [Wh | Whh]    (H, 4H)
OFF_W1 = 2 * SEG          # W1            (H, H)
OFF_W2 = 3 * SEG          # W2            (H, P)
WMAIN_COLS = 4 * SEG

R_BHID, R_BE, R_WEN, R_BEN, R_BIH, R_B1, R_GAMMA, R_BETA, R_RMEAN, R_RVAR, R_B2 = range(11)
N_ROWS = 16               # padded bias/BN row-slab height


# --------------------------- shared kernel math ------------------------------
def _hid_proj(hid, wmain_ref, rows_ref, H):
    """hid (B,H) @ [Wh | Whh] (H,4H) in ONE flat matmul -> (hid_lin (B,H), gh (B,3H))."""
    f32 = jnp.float32
    w_hid = wmain_ref[:, OFF_WHID:OFF_WHID + 4 * H]                       # (H, 4H)
    proj = (jnp.dot(hid, w_hid, preferred_element_type=f32)
            + rows_ref[R_BHID:R_BHID + 1, 0:4 * H])                       # (B, 4H)
    return proj[:, 0:H], proj[:, H:4 * H]


def _enc_projection(enc, wmain_ref, rows_ref, B, S, H):
    """enc (B,S,H) @ We (H,H) + be, folded into one (B*S,H)@(H,H) matmul."""
    f32 = jnp.float32
    we = wmain_ref[:, OFF_WE:OFF_WE + H]                                  # (H, H)
    ep = jnp.dot(enc.reshape(B * S, H), we, preferred_element_type=f32)
    return ep.reshape(B, S, H) + rows_ref[R_BE:R_BE + 1, 0:H]


def _attention(enc_proj, hid_lin, rows_ref, B, S, H):
    """Vectorized single-query attention -> lane-dense (B,1,S) weights (exact softmax)."""
    f32 = jnp.float32
    sig = jax.nn.sigmoid(enc_proj + hid_lin[:, None, :])                  # (B,S,H)
    w_en = jnp.broadcast_to(rows_ref[R_WEN:R_WEN + 1, 0:H], (B, 1, H))
    energy = (jnp.einsum('bqh,bsh->bqs', w_en, sig, preferred_element_type=f32)
              + rows_ref[R_BEN:R_BEN + 1, 0:1])                           # (B,1,S)
    m = jnp.max(energy, axis=-1, keepdims=True)
    p = jnp.exp(energy - m)
    return p / jnp.sum(p, axis=-1, keepdims=True)                         # exact reciprocal


def _gru_and_out(ctx, pal, hid, gh, wgru_ref, wmain_ref, rows_ref, H, P):
    """GRUCell(cat(pal, ctx), hid) + out MLP; input gates computed with ONE matmul."""
    f32 = jnp.float32
    gru_in = jnp.concatenate([ctx, pal], axis=-1)                         # (B, H+P)
    gx = (jnp.dot(gru_in, wgru_ref[...], preferred_element_type=f32)
          + rows_ref[R_BIH:R_BIH + 1, 0:3 * H])                           # (B, 3H)
    r = jax.nn.sigmoid(gx[:, 0:H] + gh[:, 0:H])
    z = jax.nn.sigmoid(gx[:, H:2 * H] + gh[:, H:2 * H])
    n = jnp.tanh(gx[:, 2 * H:3 * H] + r * gh[:, 2 * H:3 * H])
    h_new = (1.0 - z) * n + z * hid                                       # (B, H)

    # out = Linear -> ReLU -> BatchNorm1d (eval, running stats) -> Linear
    w1 = wmain_ref[:, OFF_W1:OFF_W1 + H]
    h1 = jnp.maximum(jnp.dot(h_new, w1, preferred_element_type=f32)
                     + rows_ref[R_B1:R_B1 + 1, 0:H], 0.0)
    bn = ((h1 - rows_ref[R_RMEAN:R_RMEAN + 1, 0:H])
          * jax.lax.rsqrt(rows_ref[R_RVAR:R_RVAR + 1, 0:H] + BN_EPS)
          * rows_ref[R_GAMMA:R_GAMMA + 1, 0:H]
          + rows_ref[R_BETA:R_BETA + 1, 0:H])
    w2 = wmain_ref[:, OFF_W2:OFF_W2 + P]
    palette = (jnp.dot(bn, w2, preferred_element_type=f32)
               + rows_ref[R_B2:R_B2 + 1, 0:P])                            # (B, P)
    return h_new, palette


# --------------------------- single-step kernel -------------------------------
def _attn_decoder_step_kernel(use_attention, S, B, H, P,
                              enc_ref, hid_ref, pal_ref, wmain_ref, wgru_ref, rows_ref,
                              out_ref):
    f32 = jnp.float32
    enc = enc_ref[...]                                                    # (B,S,H)
    hid = hid_ref[...]                                                    # (B,H)
    pal = pal_ref[...]                                                    # (B,P)

    hid_lin, gh = _hid_proj(hid, wmain_ref, rows_ref, H)

    if use_attention:
        # TODO(synk): for repeated single-step calls, use attn_decoder_decode() which
        # hoists this step-invariant enc@We projection out of the per-step work.
        enc_proj = _enc_projection(enc, wmain_ref, rows_ref, B, S, H)
        attn = _attention(enc_proj, hid_lin, rows_ref, B, S, H)           # (B,1,S)
        ctx = jnp.einsum('bqs,bsh->bqh', attn, enc,
                         preferred_element_type=f32).reshape(B, H)
        attn_pieces = [attn.reshape(B, S)]
        used = P + 2 * H + S
    else:
        ctx = jnp.mean(enc, axis=1)                                       # mean context
        attn_pieces = []
        used = P + 2 * H

    h_new, palette = _gru_and_out(ctx, pal, hid, gh, wgru_ref, wmain_ref, rows_ref, H, P)

    pieces = [palette, ctx, h_new] + attn_pieces
    pad_w = OUT_W - used
    if pad_w > 0:
        pieces.append(jnp.zeros((B, pad_w), f32))
    out_ref[...] = jnp.concatenate(pieces, axis=-1)                       # one 128-lane store


# --------------------------- fused decode-loop kernel --------------------------
def _fused_decode_kernel(S, B, H, P,
                         enc_ref, hid0_ref, pal0_ref, wmain_ref, wgru_ref, rows_ref,
                         out_ref,                    # (1, B, OUT_W) block for step t
                         hid_st, pal_st, eproj_st):  # VMEM scratch (carried state)
    f32 = jnp.float32
    t = pl.program_id(0)
    enc = enc_ref[...]                                                    # (B,S,H)

    @pl.when(t == 0)
    def _init():
        hid_st[...] = hid0_ref[...]
        pal_st[...] = pal0_ref[...]
        # hoisted, step-invariant encoder projection -> VMEM scratch
        eproj_st[...] = _enc_projection(enc, wmain_ref, rows_ref, B, S, H)

    hid = hid_st[...]
    pal = pal_st[...]
    hid_lin, gh = _hid_proj(hid, wmain_ref, rows_ref, H)

    # attention weights; step 0 uses uniform weights (== mean context, torch returns None)
    attn_sm = _attention(eproj_st[...], hid_lin, rows_ref, B, S, H)       # (B,1,S)
    attn = jnp.where(t > 0, attn_sm, jnp.full_like(attn_sm, 1.0 / S))
    ctx = jnp.einsum('bqs,bsh->bqh', attn, enc,
                     preferred_element_type=f32).reshape(B, H)

    h_new, palette = _gru_and_out(ctx, pal, hid, gh, wgru_ref, wmain_ref, rows_ref, H, P)
    hid_st[...] = h_new
    pal_st[...] = palette

    pieces = [palette, ctx, h_new, attn.reshape(B, S)]
    pad_w = OUT_W - (P + 2 * H + S)
    if pad_w > 0:
        pieces.append(jnp.zeros((B, pad_w), f32))
    out_ref[...] = jnp.concatenate(pieces, axis=-1).reshape(1, B, OUT_W)


# --------------------------- parameter handling ------------------------------
def init_params(key, H=HIDDEN, P=PALETTE):
    """Torch-equivalent parameters; Linear/GRU weights stored pre-transposed (in,out)."""
    ks = jax.random.split(key, 12)

    def lin(k, fin, fout):
        s = 1.0 / (fin ** 0.5)
        kw, kb = jax.random.split(k)
        W = jax.random.uniform(kw, (fin, fout), jnp.float32, -s, s)
        b = jax.random.uniform(kb, (1, fout), jnp.float32, -s, s)
        return W, b

    sH = 1.0 / (H ** 0.5)
    We, be = lin(ks[0], H, H)                    # attn_e
    Wh, bh = lin(ks[1], H, H)                    # attn_h
    w_en = jax.random.uniform(ks[2], (1, H), jnp.float32, -sH, sH)   # attn_energy weight
    b_en = jax.random.uniform(ks[3], (1, 1), jnp.float32, -sH, sH)
    Wih_p = jax.random.uniform(ks[4], (P, 3 * H), jnp.float32, -sH, sH)
    Wih_c = jax.random.uniform(ks[5], (H, 3 * H), jnp.float32, -sH, sH)
    bih = jax.random.uniform(ks[6], (1, 3 * H), jnp.float32, -sH, sH)
    Whh = jax.random.uniform(ks[7], (H, 3 * H), jnp.float32, -sH, sH)
    bhh = jax.random.uniform(ks[8], (1, 3 * H), jnp.float32, -sH, sH)
    W1, b1 = lin(ks[9], H, H)                    # out[0]
    gamma = jnp.ones((1, H), jnp.float32)        # out[2] BatchNorm1d (eval mode)
    beta = jnp.zeros((1, H), jnp.float32)
    rmean = jnp.zeros((1, H), jnp.float32)
    rvar = jnp.ones((1, H), jnp.float32)
    W2, b2 = lin(ks[10], H, P)                   # out[3]
    return dict(We=We, be=be, Wh=Wh, bh=bh, w_en=w_en, b_en=b_en,
                Wih_p=Wih_p, Wih_c=Wih_c, bih=bih, Whh=Whh, bhh=bhh,
                W1=W1, b1=b1, gamma=gamma, beta=beta, rmean=rmean, rvar=rvar,
                W2=W2, b2=b2)


def pack_params(p, H=HIDDEN, P=PALETTE):
    """One-time packing of the ~22 tiny tensors into 3 DMA-friendly buffers."""
    # The [Wh|Whh] segment and the packed bias row hold 4H lanes -> H must be <= 32.
    assert 4 * H <= SEG and P <= SEG, "packed layout requires 4*H <= 128 and P <= 128"
    Wm = jnp.zeros((H, WMAIN_COLS), jnp.float32)
    Wm = Wm.at[:, OFF_WE:OFF_WE + H].set(p['We'])
    Wm = Wm.at[:, OFF_WHID:OFF_WHID + 4 * H].set(jnp.concatenate([p['Wh'], p['Whh']], axis=1))
    Wm = Wm.at[:, OFF_W1:OFF_W1 + H].set(p['W1'])
    Wm = Wm.at[:, OFF_W2:OFF_W2 + P].set(p['W2'])
    Wg = jnp.concatenate([p['Wih_c'], p['Wih_p']], axis=0)          # (H+P, 3H): [ctx ; pal]
    rows = jnp.zeros((N_ROWS, 128), jnp.float32)
    rows = rows.at[R_BHID, 0:4 * H].set(jnp.concatenate([p['bh'][0], p['bhh'][0]]))
    rows = rows.at[R_BE, 0:H].set(p['be'][0])
    rows = rows.at[R_WEN, 0:H].set(p['w_en'][0])
    rows = rows.at[R_BEN, 0:1].set(p['b_en'][0])
    rows = rows.at[R_BIH, 0:3 * H].set(p['bih'][0])
    rows = rows.at[R_B1, 0:H].set(p['b1'][0])
    rows = rows.at[R_GAMMA, 0:H].set(p['gamma'][0])
    rows = rows.at[R_BETA, 0:H].set(p['beta'][0])
    rows = rows.at[R_RMEAN, 0:H].set(p['rmean'][0])
    rows = rows.at[R_RVAR, 0:H].set(p['rvar'][0])
    rows = rows.at[R_B2, 0:P].set(p['b2'][0])
    return dict(W_main=Wm, W_gru=Wg, rows=rows)


def _vmem_spec():
    return pl.BlockSpec(memory_space=pltpu.MemorySpace.VMEM)


def _step_cost(B, S, H, P, with_attn, with_enc_proj):
    flops = 2 * B * (H * 4 * H + (H + P) * 3 * H + H * H + H * P)
    transc = B * 3 * H
    if with_attn:
        flops += 2 * B * S * (H + H)          # energy reduce + context bmm
        transc += B * (S * H + S)             # sigmoid + exp
    if with_enc_proj:
        flops += 2 * B * S * H * H
    return int(flops), int(transc)


# ------------------------------- single-step forward --------------------------
def attn_decoder_forward(packed, last_palette, last_decoder_hidden,
                         encoder_outputs, each_input_size, i):
    """Mirrors AttnDecoderRNN.forward for a single decode step `i` (Python int)."""
    del each_input_size  # unused by the torch forward as well
    S, B, H = encoder_outputs.shape
    P = last_palette.shape[-1]
    assert P + 2 * H + S <= OUT_W, "output slab overflow"
    use_attention = bool(i != 0)

    # Host-side layout plumbing only.  TODO(synk): for a full decode loop use
    # attn_decoder_decode(), which does this transpose once per sequence.
    enc_b = jnp.transpose(encoder_outputs, (1, 0, 2))        # (B, S, H)
    hid2 = last_decoder_hidden.reshape(B, H)
    pal2 = last_palette.reshape(B, P)
    inputs = (enc_b, hid2, pal2, packed['W_main'], packed['W_gru'], packed['rows'])

    flops, transc = _step_cost(B, S, H, P, use_attention, use_attention)
    bytes_acc = 4 * (sum(int(x.size) for x in inputs) + B * OUT_W)

    kernel = functools.partial(_attn_decoder_step_kernel, use_attention, S, B, H, P)
    slab = pl.pallas_call(
        kernel,
        out_shape=jax.ShapeDtypeStruct((B, OUT_W), jnp.float32),
        in_specs=[_vmem_spec() for _ in inputs],
        out_specs=_vmem_spec(),
        cost_estimate=pl.CostEstimate(flops=flops, transcendentals=transc,
                                      bytes_accessed=int(bytes_acc)),
    )(*inputs)

    palette = slab[:, 0:P]
    ctx = slab[:, P:P + H]
    gru_hidden = slab[:, P + H:P + 2 * H]
    if use_attention:
        attn = slab[:, P + 2 * H:P + 2 * H + S].reshape(B, 1, S)
        # torch: context.unsqueeze(0) where context is (B,1,H) -> (1,B,1,H)
        return palette, ctx.reshape(1, B, 1, H), gru_hidden, attn
    else:
        # torch: mean-context (1,B,H) then unsqueeze(0) -> (1,1,B,H); attn is None
        return palette, ctx.reshape(1, 1, B, H), gru_hidden, None


# ------------------------------- fused decode loop -----------------------------
def attn_decoder_decode(packed, init_palette, init_hidden, encoder_outputs, num_steps):
    """Runs decode steps i=0..T-1 (feeding palette/hidden back) in ONE pallas_call.

    Returns (palettes (T,B,P), contexts (T,B,H), hiddens (T,B,H), attns (T,B,S)).
    Row 0 of `attns` is uniform 1/S (torch returns None for i==0).
    """
    S, B, H = encoder_outputs.shape
    P = init_palette.shape[-1]
    T = int(num_steps)
    assert P + 2 * H + S <= OUT_W, "output slab overflow"

    enc_b = jnp.transpose(encoder_outputs, (1, 0, 2))        # once per sequence
    hid2 = init_hidden.reshape(B, H)
    pal2 = init_palette.reshape(B, P)
    Wm, Wg, rows = packed['W_main'], packed['W_gru'], packed['rows']

    step_flops, step_transc = _step_cost(B, S, H, P, True, False)
    proj_flops, _ = _step_cost(B, S, H, P, False, True)
    flops = T * step_flops + (proj_flops - _step_cost(B, S, H, P, False, False)[0])
    bytes_acc = 4 * (enc_b.size + hid2.size + pal2.size + Wm.size + Wg.size + rows.size
                     + T * B * OUT_W)

    kernel = functools.partial(_fused_decode_kernel, S, B, H, P)
    grid_spec = pltpu.PrefetchScalarGridSpec(
        num_scalar_prefetch=0,
        grid=(T,),
        in_specs=[
            pl.BlockSpec((B, S, H), lambda t: (0, 0, 0)),           # enc: DMA'd once
            pl.BlockSpec((B, H), lambda t: (0, 0)),                 # init hidden
            pl.BlockSpec((B, P), lambda t: (0, 0)),                 # init palette
            pl.BlockSpec((H, WMAIN_COLS), lambda t: (0, 0)),        # packed weights
            pl.BlockSpec((H + P, 3 * H), lambda t: (0, 0)),         # packed GRU-in weights
            pl.BlockSpec((N_ROWS, 128), lambda t: (0, 0)),          # bias/BN rows
        ],
        out_specs=pl.BlockSpec((1, B, OUT_W), lambda t: (t, 0, 0)),
        scratch_shapes=[
            pltpu.VMEM((B, H), jnp.float32),       # carried GRU hidden
            pltpu.VMEM((B, P), jnp.float32),       # carried palette
            pltpu.VMEM((B, S, H), jnp.float32),    # hoisted enc@We+be
        ],
    )
    slab = pl.pallas_call(
        kernel,
        out_shape=jax.ShapeDtypeStruct((T, B, OUT_W), jnp.float32),
        grid_spec=grid_spec,
        compiler_params=pltpu.CompilerParams(dimension_semantics=("arbitrary",)),
        cost_estimate=pl.CostEstimate(flops=int(flops),
                                      transcendentals=int(T * step_transc),
                                      bytes_accessed=int(bytes_acc)),
    )(enc_b, hid2, pal2, Wm, Wg, rows)

    palettes = slab[:, :, 0:P]
    contexts = slab[:, :, P:P + H]
    hiddens = slab[:, :, P + H:P + 2 * H]
    attns = slab[:, :, P + 2 * H:P + 2 * H + S]
    return palettes, contexts, hiddens, attns


# ---------------- pure-JAX reference (sanity check only) ----------------
def _reference_forward(params, pal, hid, enc, i):
    S, B, H = enc.shape
    p = params
    if i == 0:
        context = jnp.mean(enc, axis=0)
        attn_w = None
    else:
        hidden_lin = hid @ p['Wh'] + p['bh']
        enc_lin = jnp.einsum('sbh,hk->sbk', enc, p['We']) + p['be'][None]
        sig = jax.nn.sigmoid(enc_lin + hidden_lin[None])
        energy = jnp.sum(sig * p['w_en'][None], axis=-1, keepdims=True) + p['b_en'][0, 0]
        attn = jax.nn.softmax(energy, axis=0)                      # (S,B,1)
        context = jnp.sum(attn * enc, axis=0)
        attn_w = jnp.transpose(attn, (1, 2, 0))                    # (B,1,S)
    gx = pal @ p['Wih_p'] + context @ p['Wih_c'] + p['bih']
    gh = hid @ p['Whh'] + p['bhh']
    r = jax.nn.sigmoid(gx[:, :H] + gh[:, :H])
    z = jax.nn.sigmoid(gx[:, H:2 * H] + gh[:, H:2 * H])
    n = jnp.tanh(gx[:, 2 * H:] + r * gh[:, 2 * H:])
    h_new = (1.0 - z) * n + z * hid
    h1 = jnp.maximum(h_new @ p['W1'] + p['b1'], 0.0)
    bn = (h1 - p['rmean']) / jnp.sqrt(p['rvar'] + BN_EPS) * p['gamma'] + p['beta']
    palette = bn @ p['W2'] + p['b2']
    return palette, context, h_new, attn_w


if __name__ == "__main__":
    B, S, H, P, T = 2, 8, HIDDEN, PALETTE, 4
    key = jax.random.PRNGKey(0)
    k1, k2, k3, kp = jax.random.split(key, 4)
    encoder_outputs = jax.random.normal(k1, (S, B, H), jnp.float32)
    last_decoder_hidden = jax.random.normal(k2, (B, H), jnp.float32)
    last_palette = jax.random.normal(k3, (B, P), jnp.float32)
    params = init_params(kp, H, P)
    packed = pack_params(params, H, P)          # one-time weight packing

    # ---- single-step forward (module-equivalent API), i==0 and i>0 branches ----
    pal0, ctx0, hid0, attn0 = attn_decoder_forward(
        packed, last_palette, last_decoder_hidden, encoder_outputs, None, 0)
    pal1, ctx1, hid1, attn1 = attn_decoder_forward(
        packed, last_palette, last_decoder_hidden, encoder_outputs, None, 1)

    # ---- fused decode loop: T steps in one pallas_call -------------------------
    pals, ctxs, hids, attns = attn_decoder_decode(
        packed, last_palette, last_decoder_hidden, encoder_outputs, T)
    jax.block_until_ready((pal0, ctx0, hid0, pal1, ctx1, hid1, attn1,
                           pals, ctxs, hids, attns))

    tol = dict(rtol=1e-3, atol=1e-3)

    # single-step checks against the pure-JAX reference
    rpal0, rctx0, rhid0, _ = _reference_forward(
        params, last_palette, last_decoder_hidden, encoder_outputs, 0)
    rpal1, rctx1, rhid1, rattn1 = _reference_forward(
        params, last_palette, last_decoder_hidden, encoder_outputs, 1)
    assert attn0 is None
    assert jnp.allclose(pal0, rpal0, **tol), "i=0 palette mismatch"
    assert jnp.allclose(ctx0[0, 0], rctx0, **tol), "i=0 context mismatch"
    assert jnp.allclose(hid0, rhid0, **tol), "i=0 hidden mismatch"
    assert jnp.allclose(pal1, rpal1, **tol), "i>0 palette mismatch"
    assert jnp.allclose(ctx1[0, :, 0, :], rctx1, **tol), "i>0 context mismatch"
    assert jnp.allclose(hid1, rhid1, **tol), "i>0 hidden mismatch"
    assert jnp.allclose(attn1, rattn1, **tol), "attn weights mismatch"

    # fused loop check: equivalent to T feedback-chained calls of forward()
    pal_t, hid_t = last_palette, last_decoder_hidden
    for t in range(T):
        rpal, rctx, rhid, rattn = _reference_forward(params, pal_t, hid_t,
                                                     encoder_outputs, t)
        assert jnp.allclose(pals[t], rpal, **tol), f"fused step {t} palette mismatch"
        assert jnp.allclose(ctxs[t], rctx, **tol), f"fused step {t} context mismatch"
        assert jnp.allclose(hids[t], rhid, **tol), f"fused step {t} hidden mismatch"
        if t > 0:
            assert jnp.allclose(attns[t], rattn.reshape(B, S), **tol), \
                f"fused step {t} attn mismatch"
        pal_t, hid_t = rpal, rhid

    print("KERNEL_OK")
</pallas_src>

<mosaic_0001>
module attributes {stable_mosaic.version = 11 : i64} {
  func.func @_attn_decoder_step_kernel(%arg0: memref<2x8x32xf32, #tpu.memory_space<vmem>>, %arg1: memref<2x32xf32, #tpu.memory_space<vmem>>, %arg2: memref<2x3xf32, #tpu.memory_space<vmem>>, %arg3: memref<32x512xf32, #tpu.memory_space<vmem>>, %arg4: memref<35x96xf32, #tpu.memory_space<vmem>>, %arg5: memref<16x128xf32, #tpu.memory_space<vmem>>, %arg6: memref<2x128xf32, #tpu.memory_space<vmem>>) attributes {dimension_semantics = [], scalar_prefetch = 0 : i64, scratch_operands = 0 : i64, tpu.core_type = #tpu.core_type<tc>} {
    %c0 = arith.constant 0 : index
    %c0_0 = arith.constant 0 : index
    %c0_1 = arith.constant 0 : index
    %0 = vector.load %arg0[%c0, %c0_0, %c0_1] : memref<2x8x32xf32, #tpu.memory_space<vmem>>, vector<2x8x32xf32>
    %c0_2 = arith.constant 0 : index
    %c0_3 = arith.constant 0 : index
    %1 = vector.load %arg1[%c0_2, %c0_3] : memref<2x32xf32, #tpu.memory_space<vmem>>, vector<2x32xf32>
    %c0_4 = arith.constant 0 : index
    %c0_5 = arith.constant 0 : index
    %2 = vector.load %arg2[%c0_4, %c0_5] : memref<2x3xf32, #tpu.memory_space<vmem>>, vector<2x3xf32>
    %c0_6 = arith.constant 0 : index
    %c128 = arith.constant 128 : index
    %3 = vector.load %arg3[%c0_6, %c128] : memref<32x512xf32, #tpu.memory_space<vmem>>, vector<32x128xf32>
    %cst = arith.constant dense<0.000000e+00> : vector<2x128xf32>
    %4 = tpu.matmul %1, %3, %cst {dimension_numbers = #tpu.dot_dimension_numbers<[1], [0], [0], [1], [0, 0, 1, 1], [], []>} : vector<2x32xf32>, vector<32x128xf32>, vector<2x128xf32> -> vector<2x128xf32>
    %c0_7 = arith.constant 0 : index
    %c0_8 = arith.constant 0 : index
    %5 = vector.load %arg5[%c0_7, %c0_8] : memref<16x128xf32, #tpu.memory_space<vmem>>, vector<1x128xf32>
    %6 = vector.broadcast %5 : vector<1x128xf32> to vector<2x128xf32>
    %7 = arith.addf %4, %6 : vector<2x128xf32>
    %8 = vector.extract_strided_slice %7 {offsets = [0, 32], sizes = [2, 96], strides = [1, 1]} : vector<2x128xf32> to vector<2x96xf32>
    %cst_9 = arith.constant dense<0.000000e+00> : vector<2x32xf32>
    %9 = vector.multi_reduction <add>, %0, %cst_9 [1] : vector<2x8x32xf32> to vector<2x32xf32>
    %cst_10 = arith.constant 8.000000e+00 : f32
    %10 = vector.broadcast %cst_10 : f32 to vector<2x32xf32>
    %11 = arith.divf %9, %10 : vector<2x32xf32>
    %12 = tpu.concatenate %11, %2 in 1 : vector<2x32xf32>, vector<2x3xf32> -> vector<2x35xf32>
    %c0_11 = arith.constant 0 : index
    %c0_12 = arith.constant 0 : index
    %13 = vector.load %arg4[%c0_11, %c0_12] : memref<35x96xf32, #tpu.memory_space<vmem>>, vector<35x96xf32>
    %cst_13 = arith.constant dense<0.000000e+00> : vector<2x96xf32>
    %14 = tpu.matmul %12, %13, %cst_13 {dimension_numbers = #tpu.dot_dimension_numbers<[1], [0], [0], [1], [0, 0, 1, 1], [], []>} : vector<2x35xf32>, vector<35x96xf32>, vector<2x96xf32> -> vector<2x96xf32>
    %c4 = arith.constant 4 : index
    %c0_14 = arith.constant 0 : index
    %15 = vector.load %arg5[%c4, %c0_14] : memref<16x128xf32, #tpu.memory_space<vmem>>, vector<1x96xf32>
    %16 = vector.broadcast %15 : vector<1x96xf32> to vector<2x96xf32>
    %17 = arith.addf %14, %16 : vector<2x96xf32>
    %18 = vector.extract_strided_slice %17 {offsets = [0, 0], sizes = [2, 32], strides = [1, 1]} : vector<2x96xf32> to vector<2x32xf32>
    %19 = vector.extract_strided_slice %8 {offsets = [0, 0], sizes = [2, 32], strides = [1, 1]} : vector<2x96xf32> to vector<2x32xf32>
    %20 = arith.addf %18, %19 : vector<2x32xf32>
    %21 = arith.negf %20 : vector<2x32xf32>
    %22 = math.exp %21 : vector<2x32xf32>
    %cst_15 = arith.constant 1.000000e+00 : f32
    %23 = vector.broadcast %cst_15 : f32 to vector<2x32xf32>
    %24 = arith.addf %23, %22 : vector<2x32xf32>
    %25 = arith.divf %23, %24 : vector<2x32xf32>
    %26 = vector.extract_strided_slice %17 {offsets = [0, 32], sizes = [2, 32], strides = [1, 1]} : vector<2x96xf32> to vector<2x32xf32>
    %27 = vector.extract_strided_slice %8 {offsets = [0, 32], sizes = [2, 32], strides = [1, 1]} : vector<2x96xf32> to vector<2x32xf32>
    %28 = arith.addf %26, %27 : vector<2x32xf32>
    %29 = arith.negf %28 : vector<2x32xf32>
    %30 = math.exp %29 : vector<2x32xf32>
    %cst_16 = arith.constant 1.000000e+00 : f32
    %31 = vector.broadcast %cst_16 : f32 to vector<2x32xf32>
    %32 = arith.addf %31, %30 : vector<2x32xf32>
    %33 = arith.divf %31, %32 : vector<2x32xf32>
    %34 = vector.extract_strided_slice %17 {offsets = [0, 64], sizes = [2, 32], strides = [1, 1]} : vector<2x96xf32> to vector<2x32xf32>
    %35 = vector.extract_strided_slice %8 {offsets = [0, 64], sizes = [2, 32], strides = [1, 1]} : vector<2x96xf32> to vector<2x32xf32>
    %36 = arith.mulf %25, %35 : vector<2x32xf32>
    %37 = arith.addf %34, %36 : vector<2x32xf32>
    %38 = math.tanh %37 : vector<2x32xf32>
    %cst_17 = arith.constant 1.000000e+00 : f32
    %39 = vector.broadcast %cst_17 : f32 to vector<2x32xf32>
    %40 = arith.subf %39, %33 : vector<2x32xf32>
    %41 = arith.mulf %40, %38 : vector<2x32xf32>
    %42 = arith.mulf %33, %1 : vector<2x32xf32>
    %43 = arith.addf %41, %42 : vector<2x32xf32>
    %c0_18 = arith.constant 0 : index
    %c256 = arith.constant 256 : index
    %44 = vector.load %arg3[%c0_18, %c256] : memref<32x512xf32, #tpu.memory_space<vmem>>, vector<32x32xf32>
    %cst_19 = arith.constant dense<0.000000e+00> : vector<2x32xf32>
    %45 = tpu.matmul %43, %44, %cst_19 {dimension_numbers = #tpu.dot_dimension_numbers<[1], [0], [0], [1], [0, 0, 1, 1], [], []>} : vector<2x32xf32>, vector<32x32xf32>, vector<2x32xf32> -> vector<2x32xf32>
    %c5 = arith.constant 5 : index
    %c0_20 = arith.constant 0 : index
    %46 = vector.load %arg5[%c5, %c0_20] : memref<16x128xf32, #tpu.memory_space<vmem>>, vector<1x32xf32>
    %47 = vector.broadcast %46 : vector<1x32xf32> to vector<2x32xf32>
    %48 = arith.addf %45, %47 : vector<2x32xf32>
    %cst_21 = arith.constant 0.000000e+00 : f32
    %49 = vector.broadcast %cst_21 : f32 to vector<2x32xf32>
    %50 = arith.maximumf %48, %49 : vector<2x32xf32>
    %c8 = arith.constant 8 : index
    %c0_22 = arith.constant 0 : index
    %51 = vector.load %arg5[%c8, %c0_22] : memref<16x128xf32, #tpu.memory_space<vmem>>, vector<1x32xf32>
    %52 = vector.broadcast %51 : vector<1x32xf32> to vector<2x32xf32>
    %53 = arith.subf %50, %52 : vector<2x32xf32>
    %c9 = arith.constant 9 : index
    %c0_23 = arith.constant 0 : index
    %54 = vector.load %arg5[%c9, %c0_23] : memref<16x128xf32, #tpu.memory_space<vmem>>, vector<1x32xf32>
    %cst_24 = arith.constant 9.99999974E-6 : f32
    %55 = vector.broadcast %cst_24 : f32 to vector<1x32xf32>
    %56 = arith.addf %54, %55 : vector<1x32xf32>
    %57 = math.rsqrt %56 : vector<1x32xf32>
    %58 = vector.broadcast %57 : vector<1x32xf32> to vector<2x32xf32>
    %59 = arith.mulf %53, %58 : vector<2x32xf32>
    %c6 = arith.constant 6 : index
    %c0_25 = arith.constant 0 : index
    %60 = vector.load %arg5[%c6, %c0_25] : memref<16x128xf32, #tpu.memory_space<vmem>>, vector<1x32xf32>
    %61 = vector.broadcast %60 : vector<1x32xf32> to vector<2x32xf32>
    %62 = arith.mulf %59, %61 : vector<2x32xf32>
    %c7 = arith.constant 7 : index
    %c0_26 = arith.constant 0 : index
    %63 = vector.load %arg5[%c7, %c0_26] : memref<16x128xf32, #tpu.memory_space<vmem>>, vector<1x32xf32>
    %64 = vector.broadcast %63 : vector<1x32xf32> to vector<2x32xf32>
    %65 = arith.addf %62, %64 : vector<2x32xf32>
    %c0_27 = arith.constant 0 : index
    %c384 = arith.constant 384 : index
    %66 = vector.load %arg3[%c0_27, %c384] : memref<32x512xf32, #tpu.memory_space<vmem>>, vector<32x3xf32>
    %cst_28 = arith.constant dense<0.000000e+00> : vector<2x3xf32>
    %67 = tpu.matmul %65, %66, %cst_28 {dimension_numbers = #tpu.dot_dimension_numbers<[1], [0], [0], [1], [0, 0, 1, 1], [], []>} : vector<2x32xf32>, vector<32x3xf32>, vector<2x3xf32> -> vector<2x3xf32>
    %c10 = arith.constant 10 : index
    %c0_29 = arith.constant 0 : index
    %68 = vector.load %arg5[%c10, %c0_29] : memref<16x128xf32, #tpu.memory_space<vmem>>, vector<1x3xf32>
    %69 = vector.broadcast %68 : vector<1x3xf32> to vector<2x3xf32>
    %70 = arith.addf %67, %69 : vector<2x3xf32>
    %cst_30 = arith.constant 0.000000e+00 : f32
    %71 = vector.broadcast %cst_30 : f32 to vector<2x61xf32>
    %72 = tpu.concatenate %70, %11, %43, %71 in 1 : vector<2x3xf32>, vector<2x32xf32>, vector<2x32xf32>, vector<2x61xf32> -> vector<2x128xf32>
    %c0_31 = arith.constant 0 : index
    %c0_32 = arith.constant 0 : index
    %73 = vector.load %arg6[%c0_31, %c0_32] : memref<2x128xf32, #tpu.memory_space<vmem>>, vector<2x128xf32>
    tpu.vector_store %arg6[%c0_31, %c0_32], %72 {strides = array<i32>} : memref<2x128xf32, #tpu.memory_space<vmem>>, vector<2x128xf32>,
    return
  }
}

</mosaic_0001>

<llo_original>
// kernel: tpu_custom_call.1
$region0: #{tpu_custom_call.1}
  #allocation0 [shape = 'u32[]', space=smem, size = 0x4, offset = 0x4, fixed_abs, tag = 'smem constant byte address 0x4 - core index']
  #allocation1 [shape = 'u32[144,128]{1,0:T(1,128)}', space=vmem, size = 0x12000, scoped, tag = 'internal scratch']
  %s0 = inlined_call_operand.hbm [shape: f32[2,8,32], index: 0, kind: input, shape index: {}]
  %s1 = inlined_call_operand.hbm [shape: f32[2,32], index: 1, kind: input, shape index: {}]
  %s2 = inlined_call_operand.vmem [shape: f32[2,3], index: 2, kind: input, shape index: {}]
  %s3 = inlined_call_operand.hbm [shape: f32[32,512], index: 3, kind: input, shape index: {}]
  %s4 = inlined_call_operand.hbm [shape: f32[35,96], index: 4, kind: input, shape index: {}]
  %s5 = inlined_call_operand.hbm [shape: f32[16,128], index: 5, kind: input, shape index: {}]
  %s6 = inlined_call_operand.hbm [shape: f32[2,128], index: 6, kind: output, shape index: {}]
  %s7 = sld [smem:[#allocation0]]
  $region54: #{tpu_custom_call.1} parent=0
    _
  %s9 = ssub.s32 1, %s7
  %s10 = scalar_select 0, %s9, %s7
  $region1: #{tpu_custom_call.1} parent=0
    #allocation2 [shape = 'u8[8192]{0}', space=vmem, size = 0x2000, scoped, tag = 'input window, operand 0, single buffered']
    #allocation3 [shape = 's32[1]{0}', space=sflag, size = 0x4, scoped, tag = 'scoped memory for tpu_custom_call.1']
    #allocation4 [shape = 's32[1]{0}', space=sflag, size = 0x4, scoped, tag = 'scoped memory for tpu_custom_call.1']
    #allocation5 [shape = 'u8[1024]{0}', space=vmem, size = 0x400, scoped, tag = 'input window, operand 1, single buffered']
    #allocation6 [shape = 's32[1]{0}', space=sflag, size = 0x4, scoped, tag = 'scoped memory for tpu_custom_call.1']
    #allocation7 [shape = 'u8[65536]{0}', space=vmem, size = 0x10000, scoped, tag = 'input window, operand 3, single buffered']
    #allocation8 [shape = 'u8[20480]{0}', space=vmem, size = 0x5000, scoped, tag = 'input window, operand 4, single buffered']
    #allocation9 [shape = 's32[1]{0}', space=sflag, size = 0x4, scoped, tag = 'scoped memory for tpu_custom_call.1']
    #allocation10 [shape = 'u8[8192]{0}', space=vmem, size = 0x2000, scoped, tag = 'input window, operand 5, single buffered']
    #allocation11 [shape = 'u8[1024]{0}', space=vmem, size = 0x400, scoped, tag = 'output window, operand 0, single buffered']
    %11 = vsyncpa [#allocation3], 0
    %12 = vsyncpa [#allocation6], 0
    %13 = vsyncpa [#allocation9], 0
    %14 = vsyncpa [#allocation4], 0
    // Predicated region
    $region2: #{tpu_custom_call.1} parent=1 // pred_check
      _
    $region3: #{tpu_custom_call.1} parent=1 // pred_check_branch
      %16 = sbr.rel (0) target = $region5
    $region4: #{tpu_custom_call.1} parent=1 // pred_region
      %s18 = ssub.s32 256, 256
      %19 = vsyncadd [#allocation3], %s18
      %s20 = sshll.u32 [#allocation2], 4
      %s21 = int_to_ptr.vmem [resolvable:$true] %s20
      %26 = dma.hbm_to_vmem [thread:$0]  %s0, 256, %s21, [#allocation3], 128, 128, 8
    $region5: #{tpu_custom_call.1} parent=1 // pred_fallthru
      _
    // Predicated region
    $region6: #{tpu_custom_call.1} parent=1 // pred_check
      _
    $region7: #{tpu_custom_call.1} parent=1 // pred_check_branch
      %28 = sbr.rel (0) target = $region9
    $region8: #{tpu_custom_call.1} parent=1 // pred_region
      %s30 = ssub.s32 32, 32
      %31 = vsyncadd [#allocation6], %s30
      %s33 = sshll.u32 [#allocation5], 4
      %s34 = int_to_ptr.vmem [resolvable:$true] %s33
      %36 = dma.hbm_to_vmem [thread:$0]  %s1, 32, %s34, [#allocation6]
    $region9: #{tpu_custom_call.1} parent=1 // pred_fallthru
      _
    // Predicated region
    $region10: #{tpu_custom_call.1} parent=1 // pred_check
      _
    $region11: #{tpu_custom_call.1} parent=1 // pred_check_branch
      %38 = sbr.rel (0) target = $region13
    $region12: #{tpu_custom_call.1} parent=1 // pred_region
      _
    $region13: #{tpu_custom_call.1} parent=1 // pred_fallthru
      _
    // Predicated region
    $region14: #{tpu_custom_call.1} parent=1 // pred_check
      _
    $region15: #{tpu_custom_call.1} parent=1 // pred_check_branch
      %40 = sbr.rel (0) target = $region17
    $region16: #{tpu_custom_call.1} parent=1 // pred_region
      %s42 = ssub.s32 2048, 2048
      %43 = vsyncadd [#allocation6], %s42
      %s44 = sshll.u32 [#allocation7], 4
      %s45 = int_to_ptr.vmem [resolvable:$true] %s44
      %50 = dma.hbm_to_vmem [thread:$0]  %s3, 2048, %s45, [#allocation6], 512, 512, 32
    $region17: #{tpu_custom_call.1} parent=1 // pred_fallthru
      _
    // Predicated region
    $region18: #{tpu_custom_call.1} parent=1 // pred_check
      _
    $region19: #{tpu_custom_call.1} parent=1 // pred_check_branch
      %52 = sbr.rel (0) target = $region21
    $region20: #{tpu_custom_call.1} parent=1 // pred_region
      %s54 = ssub.s32 640, 640
      %55 = vsyncadd [#allocation9], %s54
      %s56 = sshll.u32 [#allocation8], 4
      %s57 = int_to_ptr.vmem [resolvable:$true] %s56
      %62 = dma.hbm_to_vmem [thread:$0]  %s4, 640, %s57, [#allocation9], 128, 128, 8
    $region21: #{tpu_custom_call.1} parent=1 // pred_fallthru
      _
    // Predicated region
    $region22: #{tpu_custom_call.1} parent=1 // pred_check
      _
    $region23: #{tpu_custom_call.1} parent=1 // pred_check_branch
      %64 = sbr.rel (0) target = $region25
    $region24: #{tpu_custom_call.1} parent=1 // pred_region
      %s66 = ssub.s32 256, 256
      %67 = vsyncadd [#allocation9], %s66
      %s68 = sshll.u32 [#allocation10], 4
      %s69 = int_to_ptr.vmem [resolvable:$true] %s68
      %74 = dma.hbm_to_vmem [thread:$0]  %s5, 256, %s69, [#allocation9], 128, 128, 8
    $region25: #{tpu_custom_call.1} parent=1 // pred_fallthru
      _
    // Predicated region
    $region26: #{tpu_custom_call.1} parent=1 // pred_check
      _
    $region27: #{tpu_custom_call.1} parent=1 // pred_check_branch
      %76 = sbr.rel (0) target = $region29
    $region28: #{tpu_custom_call.1} parent=1 // pred_region
      %77 = dma.done [#allocation3], 256
    $region29: #{tpu_custom_call.1} parent=1 // pred_fallthru
      _
    // Predicated region
    $region30: #{tpu_custom_call.1} parent=1 // pred_check
      _
    $region31: #{tpu_custom_call.1} parent=1 // pred_check_branch
      %79 = sbr.rel (0) target = $region33
    $region32: #{tpu_custom_call.1} parent=1 // pred_region
      %80 = dma.done [#allocation6], 32
    $region33: #{tpu_custom_call.1} parent=1 // pred_fallthru
      _
    // Predicated region
    $region34: #{tpu_custom_call.1} parent=1 // pred_check
      _
    $region35: #{tpu_custom_call.1} parent=1 // pred_check_branch
      %82 = sbr.rel (0) target = $region37
    $region36: #{tpu_custom_call.1} parent=1 // pred_region
      %83 = dma.done [#allocation6], 2048
    $region37: #{tpu_custom_call.1} parent=1 // pred_fallthru
      _
    // Predicated region
    $region38: #{tpu_custom_call.1} parent=1 // pred_check
      _
    $region39: #{tpu_custom_call.1} parent=1 // pred_check_branch
      %85 = sbr.rel (0) target = $region41
    $region40: #{tpu_custom_call.1} parent=1 // pred_region
      %86 = dma.done [#allocation9], 640
    $region41: #{tpu_custom_call.1} parent=1 // pred_fallthru
      _
    // Predicated region
    $region42: #{tpu_custom_call.1} parent=1 // pred_check
      _
    $region43: #{tpu_custom_call.1} parent=1 // pred_check_branch
      %88 = sbr.rel (0) target = $region45
    $region44: #{tpu_custom_call.1} parent=1 // pred_region
      %89 = dma.done [#allocation9], 256
    $region45: #{tpu_custom_call.1} parent=1 // pred_fallthru
      _
    %v90 = vld [vmem:[#allocation2] sm:$0xff]
    %v91 = vld [vmem:[#allocation2 + $0x8] sm:$0xff]
    %v92 = vld [vmem:[#allocation5] sm:$0x3]
    %v93 = vld [vmem:[%s2] sm:$0x3]
    %v94 = vld [vmem:[#allocation7 + $0x8] sm:$0xff]
    %v95 = vld [vmem:[#allocation7 + $0x28] sm:$0xff]
    %v96 = vld [vmem:[#allocation7 + $0x48] sm:$0xff]
    %v97 = vld [vmem:[#allocation7 + $0x68] sm:$0xff]
    %v98 = vld [vmem:[#allocation10] sm:$0x1]
    %v99 = vlaneseq
    %v100 = vshrl.u32 %v99, 7
    %v101 = vsub.s32 0, %v100
    %v102 = vrot.slane %v98, %v101
    %vm103 = vcmask 261120
    %v105 = vsel %vm103, %v92, 0
    %107 = vmatprep.subr.mxu0 0.0
    %108 = vmatpush1.msra.mxu0 0.0
    %109 = vmatprep.subr.mxu0 0.0
    %110 = vmatpush1.msra.mxu0 0.0
    %111 = vmatprep.subr.mxu0 0.0
    %112 = vmatpush1.msra.mxu0 0.0
    %113 = vmatprep.subr.mxu0 0.0
    %114 = vmatpush1.msra.mxu0 0.0
    %115 = vmatprep.subr.mxu0 0.0
    %116 = vmatpush1.msra.mxu0 0.0
    %117 = vmatprep.subr.mxu0 0.0
    %118 = vmatpush1.msra.mxu0 0.0
    %119 = vmatprep.subr.mxu0 0.0
    %120 = vmatpush1.msra.mxu0 0.0
    %121 = vmatprep.subr.mxu0 0.0
    %122 = vmatpush1.msra.mxu0 0.0
    %123 = vmatprep.subr.mxu0 0.0
    %124 = vmatpush1.msra.mxu0 0.0
    %125 = vmatprep.subr.mxu0 0.0
    %126 = vmatpush1.msra.mxu0 0.0
    %127 = vmatprep.subr.mxu0 0.0
    %128 = vmatpush1.msra.mxu0 0.0
    %129 = vmatprep.subr.mxu0 0.0
    %130 = vmatpush1.msra.mxu0 0.0
    %131 = vmatprep.subr.mxu0 0.0
    %132 = vmatpush1.msra.mxu0 %v97
    %133 = vmatprep.subr.mxu0 0.0
    %134 = vmatpush1.msra.mxu0 %v96
    %135 = vmatprep.subr.mxu0 0.0
    %136 = vmatpush1.msra.mxu0 %v95
    %137 = vmatprep.subr.mxu0 0.0
    %138 = vmatpush1.msra.mxu0 %v94
    %139 = vmatprep.subr.mxu0 0.0
    %140 = vmatpush2.msra.mxu0 0.0
    %141 = vmatprep.subr.mxu0 0.0
    %142 = vmatpush2.msra.mxu0 0.0
    %143 = vmatprep.subr.mxu0 0.0
    %144 = vmatpush2.msra.mxu0 0.0
    %145 = vmatprep.subr.mxu0 0.0
    %146 = vmatpush2.msra.mxu0 0.0
    %147 = vmatprep.subr.mxu0 0.0
    %148 = vmatpush2.msra.mxu0 0.0
    %149 = vmatprep.subr.mxu0 0.0
    %150 = vmatpush2.msra.mxu0 0.0
    %151 = vmatprep.subr.mxu0 0.0
    %152 = vmatpush2.msra.mxu0 0.0
    %153 = vmatprep.subr.mxu0 0.0
    %154 = vmatpush2.msra.mxu0 0.0
    %155 = vmatprep.subr.mxu0 0.0
    %156 = vmatpush2.msra.mxu0 0.0
    %157 = vmatprep.subr.mxu0 0.0
    %158 = vmatpush2.msra.mxu0 0.0
    %159 = vmatprep.subr.mxu0 0.0
    %160 = vmatpush2.msra.mxu0 0.0
    %161 = vmatprep.subr.mxu0 0.0
    %162 = vmatpush2.msra.mxu0 0.0
    %163 = vmatprep.subr.mxu0 0.0
    %164 = vmatpush2.msra.mxu0 0.0
    %165 = vmatprep.subr.mxu0 0.0
    %166 = vmatpush2.msra.mxu0 0.0
    %167 = vmatprep.subr.mxu0 0.0
    %168 = vmatpush2.msra.mxu0 0.0
    %169 = vmatprep.subr.mxu0 0.0
    %170 = vmatpush2.msra.mxu0 0.0
    %171 = vmatprep.mubr.f32.mxu0 0.0
    %172 = vmatmul.mubr.f32.gmra.mxu0 %v105
    %v173 = vpop.f32.mrf.mxu0
    %v174 = vadd.f32 %v102, %v173
    %v175 = vpop.f32.mrf.mxu0
    %176 = vdwg.mxu0
    %v177 = vsel %vm103, %v90, 0.0
    %v178 = vrot.slane %v177, 4
    %v179 = vadd.f32 %v177, %v178
    %v180 = vrot.slane %v179, 2
    %v181 = vadd.f32 %v179, %v180
    %v182 = vrot.slane %v181, 1
    %v183 = vadd.f32 %v181, %v182
    %v184 = vsel %vm103, %v91, 0.0
    %v185 = vrot.slane %v184, 4
    %v186 = vadd.f32 %v184, %v185
    %v187 = vrot.slane %v186, 2
    %v188 = vadd.f32 %v186, %v187
    %v189 = vrot.slane %v188, 1
    %v190 = vadd.f32 %v188, %v189
    %v191 = vrcp.pop 8.0
    %v192 = vmul.f32 %v183, %v191
    %v193 = vmul.f32 %v190, %v191
    %vm196 = vcmask 1041409
    %v197 = vsel %vm196, %v193, %v192
    %200 = vrot.lane.b32.xlu0 %v93, 32
    %v201 = vpop.permute.xlu0 %200
    %v203 = vsel %vm103, %v197, %v201
    %v204 = vld [vmem:[#allocation8] sm:$0xff]
    %v205 = vld [vmem:[#allocation8 + $0x8] sm:$0xff]
    %v206 = vld [vmem:[#allocation8 + $0x10] sm:$0xff]
    %v207 = vld [vmem:[#allocation8 + $0x18] sm:$0xff]
    %v208 = vld [vmem:[#allocation8 + $0x20] sm:$0x7]
    %v209 = vld [vmem:[#allocation10 + $0x4] sm:$0x1]
    %v210 = vlaneseq
    %v211 = vshrl.u32 %v210, 7
    %v212 = vsub.s32 0, %v211
    %v213 = vrot.slane %v209, %v212
    %vm214 = vcmask 285696
    %v216 = vsel %vm214, %v203, 0
    %vm218 = vcmask 1042432
    %v220 = vsel %vm218, %v208, 0
    %222 = vmatprep.subr.mxu0 0.0
    %223 = vmatpush1.msra.mxu0 0.0
    %224 = vmatprep.subr.mxu0 0.0
    %225 = vmatpush1.msra.mxu0 0.0
    %226 = vmatprep.subr.mxu0 0.0
    %227 = vmatpush1.msra.mxu0 0.0
    %228 = vmatprep.subr.mxu0 0.0
    %229 = vmatpush1.msra.mxu0 0.0
    %230 = vmatprep.subr.mxu0 0.0
    %231 = vmatpush1.msra.mxu0 0.0
    %232 = vmatprep.subr.mxu0 0.0
    %233 = vmatpush1.msra.mxu0 0.0
    %234 = vmatprep.subr.mxu0 0.0
    %235 = vmatpush1.msra.mxu0 0.0
    %236 = vmatprep.subr.mxu0 0.0
    %237 = vmatpush1.msra.mxu0 0.0
    %238 = vmatprep.subr.mxu0 0.0
    %239 = vmatpush1.msra.mxu0 0.0
    %240 = vmatprep.subr.mxu0 0.0
    %241 = vmatpush1.msra.mxu0 0.0
    %242 = vmatprep.subr.mxu0 0.0
    %243 = vmatpush1.msra.mxu0 0.0
    %244 = vmatprep.subr.mxu0 0.0
    %245 = vmatpush1.msra.mxu0 %v220
    %246 = vmatprep.subr.mxu0 0.0
    %247 = vmatpush1.msra.mxu0 %v207
    %248 = vmatprep.subr.mxu0 0.0
    %249 = vmatpush1.msra.mxu0 %v206
    %250 = vmatprep.subr.mxu0 0.0
    %251 = vmatpush1.msra.mxu0 %v205
    %252 = vmatprep.subr.mxu0 0.0
    %253 = vmatpush1.msra.mxu0 %v204
    %254 = vmatprep.subr.mxu0 0.0
    %255 = vmatpush2.msra.mxu0 0.0
    %256 = vmatprep.subr.mxu0 0.0
    %257 = vmatpush2.msra.mxu0 0.0
    %258 = vmatprep.subr.mxu0 0.0
    %259 = vmatpush2.msra.mxu0 0.0
    %260 = vmatprep.subr.mxu0 0.0
    %261 = vmatpush2.msra.mxu0 0.0
    %262 = vmatprep.subr.mxu0 0.0
    %263 = vmatpush2.msra.mxu0 0.0
    %264 = vmatprep.subr.mxu0 0.0
    %265 = vmatpush2.msra.mxu0 0.0
    %266 = vmatprep.subr.mxu0 0.0
    %267 = vmatpush2.msra.mxu0 0.0
    %268 = vmatprep.subr.mxu0 0.0
    %269 = vmatpush2.msra.mxu0 0.0
    %270 = vmatprep.subr.mxu0 0.0
    %271 = vmatpush2.msra.mxu0 0.0
    %272 = vmatprep.subr.mxu0 0.0
    %273 = vmatpush2.msra.mxu0 0.0
    %274 = vmatprep.subr.mxu0 0.0
    %275 = vmatpush2.msra.mxu0 0.0
    %276 = vmatprep.subr.mxu0 0.0
    %277 = vmatpush2.msra.mxu0 0.0
    %278 = vmatprep.subr.mxu0 0.0
    %279 = vmatpush2.msra.mxu0 0.0
    %280 = vmatprep.subr.mxu0 0.0
    %281 = vmatpush2.msra.mxu0 0.0
    %282 = vmatprep.subr.mxu0 0.0
    %283 = vmatpush2.msra.mxu0 0.0
    %284 = vmatprep.subr.mxu0 0.0
    %285 = vmatpush2.msra.mxu0 0.0
    %286 = vmatprep.mubr.f32.mxu0 0.0
    %287 = vmatmul.mubr.f32.gmra.mxu0 %v216
    %v288 = vpop.f32.mrf.mxu0
    %v289 = vadd.f32 %v213, %v288
    %v290 = vpop.f32.mrf.mxu0
    %291 = vdwg.mxu0
    %293 = vrot.lane.b32.xlu0 %v174, 96
    %v294 = vpop.permute.xlu0 %293
    %v296 = vadd.f32 %v289, %v294
    %v297 = vxor.u32 %v296, 2147483648
    %v298 = vmul.f32 %v297, 1.442695
    %v299 = vpow.pop %v298
    %v300 = vadd.f32 %v299, 1.0
    %v301 = vrcp.pop %v300
    %v302 = vmul.f32 1.0, %v301
    %303 = vrot.lane.b32.xlu0 %v174, 32
    %v304 = vpop.permute.xlu0 %303
    %v306 = vmul.f32 %v302, %v304
    %308 = vrot.lane.b32.xlu0 %v306, 64
    %v309 = vpop.permute.xlu0 %308
    %v311 = vadd.f32 %v289, %v309
    %v312 = vtanh.pop %v311
    %v313 = vsub.f32 1.0, %v302
    %315 = vrot.lane.b32.xlu0 %v312, 96
    %v316 = vpop.permute.xlu0 %315
    %v318 = vmul.f32 %v313, %v316
    %319 = vrot.lane.b32.xlu0 %v92, 32
    %v320 = vpop.permute.xlu0 %319
    %v322 = vmul.f32 %v302, %v320
    %v323 = vadd.f32 %v318, %v322
    %v324 = vld [vmem:[#allocation7 + $0x10] sm:$0xff]
    %v325 = vld [vmem:[#allocation7 + $0x30] sm:$0xff]
    %v326 = vld [vmem:[#allocation7 + $0x50] sm:$0xff]
    %v327 = vld [vmem:[#allocation7 + $0x70] sm:$0xff]
    %v328 = vld [vmem:[#allocation10 + $0x5] sm:$0x1]
    %v329 = vlaneseq
    %v330 = vshrl.u32 %v329, 7
    %v331 = vsub.s32 0, %v330
    %v332 = vrot.slane %v328, %v331
    %334 = vrot.lane.b32.xlu0 %v323, 96
    %v335 = vpop.permute.xlu0 %334
    %v336 = vsel %vm103, %v335, 0
    %338 = vmatprep.subr.mxu0 0.0
    %339 = vmatpush1.msra.mxu0 0.0
    %340 = vmatprep.subr.mxu0 0.0
    %341 = vmatpush1.msra.mxu0 0.0
    %342 = vmatprep.subr.mxu0 0.0
    %343 = vmatpush1.msra.mxu0 0.0
    %344 = vmatprep.subr.mxu0 0.0
    %345 = vmatpush1.msra.mxu0 0.0
    %346 = vmatprep.subr.mxu0 0.0
    %347 = vmatpush1.msra.mxu0 0.0
    %348 = vmatprep.subr.mxu0 0.0
    %349 = vmatpush1.msra.mxu0 0.0
    %350 = vmatprep.subr.mxu0 0.0
    %351 = vmatpush1.msra.mxu0 0.0
    %352 = vmatprep.subr.mxu0 0.0
    %353 = vmatpush1.msra.mxu0 0.0
    %354 = vmatprep.subr.mxu0 0.0
    %355 = vmatpush1.msra.mxu0 0.0
    %356 = vmatprep.subr.mxu0 0.0
    %357 = vmatpush1.msra.mxu0 0.0
    %358 = vmatprep.subr.mxu0 0.0
    %359 = vmatpush1.msra.mxu0 0.0
    %360 = vmatprep.subr.mxu0 0.0
    %361 = vmatpush1.msra.mxu0 0.0
    %362 = vmatprep.subr.mxu0 0.0
    %363 = vmatpush1.msra.mxu0 %v327
    %364 = vmatprep.subr.mxu0 0.0
    %365 = vmatpush1.msra.mxu0 %v326
    %366 = vmatprep.subr.mxu0 0.0
    %367 = vmatpush1.msra.mxu0 %v325
    %368 = vmatprep.subr.mxu0 0.0
    %369 = vmatpush1.msra.mxu0 %v324
    %370 = vmatprep.subr.mxu0 0.0
    %371 = vmatpush2.msra.mxu0 0.0
    %372 = vmatprep.subr.mxu0 0.0
    %373 = vmatpush2.msra.mxu0 0.0
    %374 = vmatprep.subr.mxu0 0.0
    %375 = vmatpush2.msra.mxu0 0.0
    %376 = vmatprep.subr.mxu0 0.0
    %377 = vmatpush2.msra.mxu0 0.0
    %378 = vmatprep.subr.mxu0 0.0
    %379 = vmatpush2.msra.mxu0 0.0
    %380 = vmatprep.subr.mxu0 0.0
    %381 = vmatpush2.msra.mxu0 0.0
    %382 = vmatprep.subr.mxu0 0.0
    %383 = vmatpush2.msra.mxu0 0.0
    %384 = vmatprep.subr.mxu0 0.0
    %385 = vmatpush2.msra.mxu0 0.0
    %386 = vmatprep.subr.mxu0 0.0
    %387 = vmatpush2.msra.mxu0 0.0
    %388 = vmatprep.subr.mxu0 0.0
    %389 = vmatpush2.msra.mxu0 0.0
    %390 = vmatprep.subr.mxu0 0.0
    %391 = vmatpush2.msra.mxu0 0.0
    %392 = vmatprep.subr.mxu0 0.0
    %393 = vmatpush2.msra.mxu0 0.0
    %394 = vmatprep.subr.mxu0 0.0
    %395 = vmatpush2.msra.mxu0 0.0
    %396 = vmatprep.subr.mxu0 0.0
    %397 = vmatpush2.msra.mxu0 0.0
    %398 = vmatprep.subr.mxu0 0.0
    %399 = vmatpush2.msra.mxu0 0.0
    %400 = vmatprep.subr.mxu0 0.0
    %401 = vmatpush2.msra.mxu0 0.0
    %402 = vmatprep.mubr.f32.mxu0 0.0
    %403 = vmatmul.mubr.f32.gmra.mxu0 %v336
    %v404 = vpop.f32.mrf.mxu0
    %v405 = vadd.f32 %v332, %v404
    %v406 = vpop.f32.mrf.mxu0
    %407 = vdwg.mxu0
    %v408 = vmax.f32 %v405, 0.0
    %v409 = vld [vmem:[#allocation10 + $0x8] sm:$0x1]
    %v410 = vlaneseq
    %v411 = vshrl.u32 %v410, 7
    %v412 = vsub.s32 0, %v411
    %v413 = vrot.slane %v409, %v412
    %v414 = vsub.f32 %v408, %v413
    %v415 = vld [vmem:[#allocation10 + $0x9] sm:$0x1]
    %v416 = vadd.f32 %v415, 1e-05
    %v417 = vrsqrt.pop %v416
    %v418 = vlaneseq
    %v419 = vshrl.u32 %v418, 7
    %v420 = vsub.s32 0, %v419
    %v421 = vrot.slane %v417, %v420
    %v422 = vmul.f32 %v414, %v421
    %v423 = vld [vmem:[#allocation10 + $0x6] sm:$0x1]
    %v424 = vlaneseq
    %v425 = vshrl.u32 %v424, 7
    %v426 = vsub.s32 0, %v425
    %v427 = vrot.slane %v423, %v426
    %v428 = vmul.f32 %v422, %v427
    %v429 = vld [vmem:[#allocation10 + $0x7] sm:$0x1]
    %v430 = vlaneseq
    %v431 = vshrl.u32 %v430, 7
    %v432 = vsub.s32 0, %v431
    %v433 = vrot.slane %v429, %v432
    %v434 = vadd.f32 %v428, %v433
    %v435 = vld [vmem:[#allocation7 + $0x18] sm:$0xff]
    %v436 = vld [vmem:[#allocation7 + $0x38] sm:$0xff]
    %v437 = vld [vmem:[#allocation7 + $0x58] sm:$0xff]
    %v438 = vld [vmem:[#allocation7 + $0x78] sm:$0xff]
    %v439 = vld [vmem:[#allocation10 + $0xa] sm:$0x1]
    %v440 = vlaneseq
    %v441 = vshrl.u32 %v440, 7
    %v442 = vsub.s32 0, %v441
    %v443 = vrot.slane %v439, %v442
    %v445 = vsel %vm103, %v434, 0
    %447 = vmatprep.subr.mxu0 0.0
    %448 = vmatpush1.msra.mxu0 0.0
    %449 = vmatprep.subr.mxu0 0.0
    %450 = vmatpush1.msra.mxu0 0.0
    %451 = vmatprep.subr.mxu0 0.0
    %452 = vmatpush1.msra.mxu0 0.0
    %453 = vmatprep.subr.mxu0 0.0
    %454 = vmatpush1.msra.mxu0 0.0
    %455 = vmatprep.subr.mxu0 0.0
    %456 = vmatpush1.msra.mxu0 0.0
    %457 = vmatprep.subr.mxu0 0.0
    %458 = vmatpush1.msra.mxu0 0.0
    %459 = vmatprep.subr.mxu0 0.0
    %460 = vmatpush1.msra.mxu0 0.0
    %461 = vmatprep.subr.mxu0 0.0
    %462 = vmatpush1.msra.mxu0 0.0
    %463 = vmatprep.subr.mxu0 0.0
    %464 = vmatpush1.msra.mxu0 0.0
    %465 = vmatprep.subr.mxu0 0.0
    %466 = vmatpush1.msra.mxu0 0.0
    %467 = vmatprep.subr.mxu0 0.0
    %468 = vmatpush1.msra.mxu0 0.0
    %469 = vmatprep.subr.mxu0 0.0
    %470 = vmatpush1.msra.mxu0 0.0
    %471 = vmatprep.subr.mxu0 0.0
    %472 = vmatpush1.msra.mxu0 %v438
    %473 = vmatprep.subr.mxu0 0.0
    %474 = vmatpush1.msra.mxu0 %v437
    %475 = vmatprep.subr.mxu0 0.0
    %476 = vmatpush1.msra.mxu0 %v436
    %477 = vmatprep.subr.mxu0 0.0
    %478 = vmatpush1.msra.mxu0 %v435
    %479 = vmatprep.subr.mxu0 0.0
    %480 = vmatpush2.msra.mxu0 0.0
    %481 = vmatprep.subr.mxu0 0.0
    %482 = vmatpush2.msra.mxu0 0.0
    %483 = vmatprep.subr.mxu0 0.0
    %484 = vmatpush2.msra.mxu0 0.0
    %485 = vmatprep.subr.mxu0 0.0
    %486 = vmatpush2.msra.mxu0 0.0
    %487 = vmatprep.subr.mxu0 0.0
    %488 = vmatpush2.msra.mxu0 0.0
    %489 = vmatprep.subr.mxu0 0.0
    %490 = vmatpush2.msra.mxu0 0.0
    %491 = vmatprep.subr.mxu0 0.0
    %492 = vmatpush2.msra.mxu0 0.0
    %493 = vmatprep.subr.mxu0 0.0
    %494 = vmatpush2.msra.mxu0 0.0
    %495 = vmatprep.subr.mxu0 0.0
    %496 = vmatpush2.msra.mxu0 0.0
    %497 = vmatprep.subr.mxu0 0.0
    %498 = vmatpush2.msra.mxu0 0.0
    %499 = vmatprep.subr.mxu0 0.0
    %500 = vmatpush2.msra.mxu0 0.0
    %501 = vmatprep.subr.mxu0 0.0
    %502 = vmatpush2.msra.mxu0 0.0
    %503 = vmatprep.subr.mxu0 0.0
    %504 = vmatpush2.msra.mxu0 0.0
    %505 = vmatprep.subr.mxu0 0.0
    %506 = vmatpush2.msra.mxu0 0.0
    %507 = vmatprep.subr.mxu0 0.0
    %508 = vmatpush2.msra.mxu0 0.0
    %509 = vmatprep.subr.mxu0 0.0
    %510 = vmatpush2.msra.mxu0 0.0
    %511 = vmatprep.mubr.f32.mxu0 0.0
    %512 = vmatmul.mubr.f32.gmra.mxu0 %v445
    %v513 = vpop.f32.mrf.mxu0
    %v514 = vadd.f32 %v443, %v513
    %v515 = vpop.f32.mrf.mxu0
    %516 = vdwg.mxu0
    %517 = vrot.lane.b32.xlu0 %v197, 3
    %v518 = vpop.permute.xlu0 %517
    %520 = vrot.lane.b32.xlu0 %v323, 3
    %v521 = vpop.permute.xlu0 %520
    %vm523 = vcmask 23552
    %v524 = vsel %vm523, %v514, %v518
    %v525 = vsel %vm214, %v524, %v521
    %vm526 = vcmask 547840
    %v527 = vsel %vm526, %v525, 0.0
    %528 = vst [vmem:[#allocation11] sm:$0x3] %v527
    // Predicated region
    $region46: #{tpu_custom_call.1} parent=1 // pred_check
      _
    $region47: #{tpu_custom_call.1} parent=1 // pred_check_branch
      %530 = sbr.rel (0) target = $region49
    $region48: #{tpu_custom_call.1} parent=1 // pred_region
      %s532 = ssub.s32 32, 32
      %533 = vsyncadd [#allocation4], %s532
      %s535 = sshll.u32 [#allocation11], 4
      %s536 = int_to_ptr.vmem [resolvable:$true] %s535
      %538 = dma.vmem_to_hbm [thread:$0]  %s536, 32, %s6, [#allocation4]
    $region49: #{tpu_custom_call.1} parent=1 // pred_fallthru
      _
    // Predicated region
    $region50: #{tpu_custom_call.1} parent=1 // pred_check
      _
    $region51: #{tpu_custom_call.1} parent=1 // pred_check_branch
      %540 = sbr.rel (0) target = $region53
    $region52: #{tpu_custom_call.1} parent=1 // pred_region
      %541 = dma.done [#allocation4], 32
    $region53: #{tpu_custom_call.1} parent=1 // pred_fallthru
      _
    %542 = vsyncpa [#allocation3], 1
    %543 = vsyncpa [#allocation6], 1
    %544 = vsyncpa [#allocation9], 1
    %545 = vsyncpa [#allocation4], 1

</llo_original>
